<compile_context>
chip_gen: v7x
topology: tpu7x:2x2x1
jax: 0.10.0
libtpu: 0.0.40
codegen_flags: <defaults>
</compile_context>

<pallas_src>
import jax
import jax.numpy as jnp
from jax.experimental import pallas as pl
from jax.experimental.pallas import tpu as pltpu

_LANE = 128
_SUBLANE = 8


def _round_up(x, m):
    return ((x + m - 1) // m) * m


def _linear_kernel(z_ref, w_ref, o_ref):
    # z_ref: (tm, H) row tile, w_ref: (H, Kp) full (lane-padded) weight,
    # o_ref: (tm, Kp) lane-dense output tile. f32 accumulation on the MXU.
    o_ref[...] = jnp.dot(
        z_ref[...], w_ref[...], preferred_element_type=jnp.float32
    ).astype(o_ref.dtype)


def bill_topic_head(z, w, *, tm=512, compute_dtype=jnp.bfloat16):
    """y = z @ w.T, matching nn.Linear(hidden_dim, k, bias=False).

    z: (N, hidden_dim), w: (k, hidden_dim)  ->  (N, k)
    """
    N, H = z.shape
    K, H2 = w.shape
    assert H == H2, "hidden_dim mismatch between z and weight"
    out_dtype = z.dtype

    # Row tile: clamp to the (sublane-rounded) problem size so small inputs run
    # as a single grid step; keep it a sublane (8) multiple.
    tm = max(_SUBLANE, _round_up(min(tm, _round_up(N, _SUBLANE)), _SUBLANE))
    Np = _round_up(N, tm)

    # Lane-dense output: pad K up to a multiple of 128 lanes.
    Kp = _round_up(K, _LANE)

    # nn.Linear weight (k, H) -> (H, Kp) so the kernel computes z @ w_t.
    w_t = jnp.transpose(w)
    if compute_dtype is not None:
        z = z.astype(compute_dtype)
        w_t = w_t.astype(compute_dtype)
    if Kp != K:
        w_t = jnp.pad(w_t, ((0, 0), (0, Kp - K)))
    if Np != N:
        z = jnp.pad(z, ((0, Np - N), (0, 0)))

    # TODO(synk): if the producer of z can emit H padded to a 128-multiple
    # (192 -> 256), the z stream avoids ~25% lane-padding waste in VMEM.

    grid = (Np // tm,)
    y = pl.pallas_call(
        _linear_kernel,
        out_shape=jax.ShapeDtypeStruct((Np, Kp), out_dtype),
        grid_spec=pltpu.PrefetchScalarGridSpec(
            num_scalar_prefetch=0,
            grid=grid,
            in_specs=[
                pl.BlockSpec((tm, H), lambda i: (i, 0)),   # streamed z row tile
                pl.BlockSpec((H, Kp), lambda i: (0, 0)),   # resident weight
            ],
            out_specs=pl.BlockSpec((tm, Kp), lambda i: (i, 0)),
        ),
        compiler_params=pltpu.CompilerParams(
            dimension_semantics=("parallel",),  # lets v7x shard rows over 2 TCs
        ),
    )(z, w_t)

    # Strip N / K padding back to the module's output shape.
    return y[:N, :K]


if __name__ == "__main__":
    hidden_dim = 192   # module default in LeGNN.py
    k = 16             # number of topics (small, synthetic)
    n_nodes = 32       # small batch of node embeddings

    key = jax.random.PRNGKey(0)
    kz, kw = jax.random.split(key)

    # Node embeddings z: (n_nodes, hidden_dim)
    z = jax.random.normal(kz, (n_nodes, hidden_dim), dtype=jnp.float32)

    # nn.Linear(hidden_dim, k, bias=False) weight: shape (k, hidden_dim),
    # deterministic Kaiming-like uniform init.
    bound = 1.0 / (hidden_dim ** 0.5)
    w = jax.random.uniform(
        kw, (k, hidden_dim), dtype=jnp.float32, minval=-bound, maxval=bound
    )

    y_ref = z @ w.T  # reference (same math as torch F.linear, no bias)

    # Exact f32 path.
    y_f32 = jax.block_until_ready(bill_topic_head(z, w, compute_dtype=None))
    assert y_f32.shape == (n_nodes, k)
    assert jnp.allclose(y_f32, y_ref, atol=1e-5, rtol=1e-5)

    # Default bf16-input / f32-accumulate perf path (looser tolerance).
    y_bf16 = jax.block_until_ready(bill_topic_head(z, w))
    assert y_bf16.shape == (n_nodes, k)
    assert jnp.allclose(y_bf16, y_ref, atol=5e-2, rtol=5e-2)

    print("KERNEL_OK")
</pallas_src>

<mosaic_0001>
module attributes {stable_mosaic.version = 11 : i64} {
  func.func @_linear_kernel(%arg0: i32, %arg1: memref<32x192xf32, #tpu.memory_space<vmem>>, %arg2: memref<192x128xf32, #tpu.memory_space<vmem>>, %arg3: memref<32x128xf32, #tpu.memory_space<vmem>>) attributes {dimension_semantics = [#tpu.dimension_semantics<parallel>], iteration_bounds = array<i64: 1>, scalar_prefetch = 0 : i64, scratch_operands = 0 : i64, tpu.core_type = #tpu.core_type<tc>, window_params = [{transform_indices = @transform_0, window_bounds = array<i64: 32, 192>}, {pipeline_mode = #tpu.pipeline_mode<synchronous>, transform_indices = @transform_1, window_bounds = array<i64: 192, 128>}, {transform_indices = @transform_2, window_bounds = array<i64: 32, 128>}]} {
    %c0 = arith.constant 0 : index
    %c0_0 = arith.constant 0 : index
    %0 = vector.load %arg1[%c0, %c0_0] : memref<32x192xf32, #tpu.memory_space<vmem>>, vector<32x192xf32>
    %c0_1 = arith.constant 0 : index
    %c0_2 = arith.constant 0 : index
    %1 = vector.load %arg2[%c0_1, %c0_2] : memref<192x128xf32, #tpu.memory_space<vmem>>, vector<192x128xf32>
    %cst = arith.constant dense<0.000000e+00> : vector<32x128xf32>
    %2 = tpu.matmul %0, %1, %cst {dimension_numbers = #tpu.dot_dimension_numbers<[1], [0], [0], [1], [0, 0, 1, 1], [], []>} : vector<32x192xf32>, vector<192x128xf32>, vector<32x128xf32> -> vector<32x128xf32>
    %c0_3 = arith.constant 0 : index
    %c0_4 = arith.constant 0 : index
    %3 = vector.load %arg3[%c0_3, %c0_4] : memref<32x128xf32, #tpu.memory_space<vmem>>, vector<32x128xf32>
    tpu.vector_store %arg3[%c0_3, %c0_4], %2 {strides = array<i32>} : memref<32x128xf32, #tpu.memory_space<vmem>>, vector<32x128xf32>,
    return
  }
  func.func @transform_0(%arg0: i32) -> (i32, i32) {
    %c0_i32 = arith.constant 0 : i32
    %c0_i32_0 = arith.constant 0 : i32
    return %arg0, %c0_i32 : i32, i32
  }
  func.func @transform_1(%arg0: i32) -> (i32, i32) {
    %c0_i32 = arith.constant 0 : i32
    %c0_i32_0 = arith.constant 0 : i32
    %c0_i32_1 = arith.constant 0 : i32
    return %c0_i32, %c0_i32_0 : i32, i32
  }
  func.func @transform_2(%arg0: i32) -> (i32, i32) {
    %c0_i32 = arith.constant 0 : i32
    %c0_i32_0 = arith.constant 0 : i32
    return %arg0, %c0_i32 : i32, i32
  }
}

</mosaic_0001>

<llo_original>
// kernel: tpu_custom_call.1
$region0: #{tpu_custom_call.1}
  #allocation0 [shape = 'u32[]', space=smem, size = 0x4, offset = 0x4, fixed_abs, tag = 'smem constant byte address 0x4 - core index']
  #allocation1 [shape = 'u32[144,128]{1,0:T(1,128)}', space=vmem, size = 0x12000, scoped, tag = 'internal scratch']
  %s0 = inlined_call_operand.hbm [shape: f32[32,192], index: 0, kind: input, shape index: {}]
  %s1 = inlined_call_operand.hbm [shape: f32[192,128], index: 1, kind: input, shape index: {}]
  %s2 = inlined_call_operand.hbm [shape: f32[32,128], index: 2, kind: output, shape index: {}]
  %s3 = sld [smem:[#allocation0]]
  $region26: #{tpu_custom_call.1} parent=0
    _
  %s5 = ssub.s32 1, %s3
  %s6 = scalar_select 0, %s5, %s3
  $region1: #{tpu_custom_call.1} parent=0
    #allocation2 [shape = 'u8[32768]{0}', space=vmem, size = 0x8000, scoped, tag = 'input window, operand 0, single buffered']
    #allocation3 [shape = 's32[1]{0}', space=sflag, size = 0x4, scoped, tag = 'scoped memory for tpu_custom_call.1']
    #allocation4 [shape = 's32[1]{0}', space=sflag, size = 0x4, scoped, tag = 'scoped memory for tpu_custom_call.1']
    #allocation5 [shape = 'u8[98304]{0}', space=vmem, size = 0x18000, scoped, tag = 'input window, operand 1, single buffered']
    #allocation6 [shape = 's32[1]{0}', space=sflag, size = 0x4, scoped, tag = 'scoped memory for tpu_custom_call.1']
    #allocation7 [shape = 'u8[16384]{0}', space=vmem, size = 0x4000, scoped, tag = 'output window, operand 0, single buffered']
    %7 = vsyncpa [#allocation3], 0
    %8 = vsyncpa [#allocation6], 0
    %9 = vsyncpa [#allocation4], 0
    // Predicated region
    $region2: #{tpu_custom_call.1} parent=1 // pred_check
      _
    $region3: #{tpu_custom_call.1} parent=1 // pred_check_branch
      %11 = sbr.rel (0) target = $region5
    $region4: #{tpu_custom_call.1} parent=1 // pred_region
      %s13 = ssub.s32 1024, 1024
      %14 = vsyncadd [#allocation3], %s13
      %s15 = sshll.u32 [#allocation2], 4
      %s16 = int_to_ptr.vmem [resolvable:$true] %s15
      %21 = dma.hbm_to_vmem [thread:$0]  %s0, 1024, %s16, [#allocation3], 256, 256, 16
    $region5: #{tpu_custom_call.1} parent=1 // pred_fallthru
      _
    // Predicated region
    $region6: #{tpu_custom_call.1} parent=1 // pred_check
      _
    $region7: #{tpu_custom_call.1} parent=1 // pred_check_branch
      %23 = sbr.rel (0) target = $region9
    $region8: #{tpu_custom_call.1} parent=1 // pred_region
      %s25 = ssub.s32 3072, 3072
      %26 = vsyncadd [#allocation6], %s25
      %s27 = sshll.u32 [#allocation5], 4
      %s28 = int_to_ptr.vmem [resolvable:$true] %s27
      %33 = dma.hbm_to_vmem [thread:$0]  %s1, 3072, %s28, [#allocation6], 128, 128, 8
    $region9: #{tpu_custom_call.1} parent=1 // pred_fallthru
      _
    // Predicated region
    $region10: #{tpu_custom_call.1} parent=1 // pred_check
      _
    $region11: #{tpu_custom_call.1} parent=1 // pred_check_branch
      %35 = sbr.rel (0) target = $region13
    $region12: #{tpu_custom_call.1} parent=1 // pred_region
      %36 = dma.done [#allocation3], 1024
    $region13: #{tpu_custom_call.1} parent=1 // pred_fallthru
      _
    // Predicated region
    $region14: #{tpu_custom_call.1} parent=1 // pred_check
      _
    $region15: #{tpu_custom_call.1} parent=1 // pred_check_branch
      %38 = sbr.rel (0) target = $region17
    $region16: #{tpu_custom_call.1} parent=1 // pred_region
      %39 = dma.done [#allocation6], 3072
    $region17: #{tpu_custom_call.1} parent=1 // pred_fallthru
      _
    %v40 = vld [vmem:[#allocation2] sm:$0xff]
    %v41 = vld [vmem:[#allocation2 + $0x8] sm:$0xff]
    %v42 = vld [vmem:[#allocation2 + $0x10] sm:$0xff]
    %v43 = vld [vmem:[#allocation2 + $0x18] sm:$0xff]
    %v44 = vld [vmem:[#allocation2 + $0x20] sm:$0xff]
    %v45 = vld [vmem:[#allocation2 + $0x28] sm:$0xff]
    %v46 = vld [vmem:[#allocation2 + $0x30] sm:$0xff]
    %v47 = vld [vmem:[#allocation2 + $0x38] sm:$0xff]
    %v48 = vld [vmem:[#allocation5] sm:$0xff]
    %v49 = vld [vmem:[#allocation5 + $0x8] sm:$0xff]
    %v50 = vld [vmem:[#allocation5 + $0x10] sm:$0xff]
    %v51 = vld [vmem:[#allocation5 + $0x18] sm:$0xff]
    %v52 = vld [vmem:[#allocation5 + $0x20] sm:$0xff]
    %v53 = vld [vmem:[#allocation5 + $0x28] sm:$0xff]
    %v54 = vld [vmem:[#allocation5 + $0x30] sm:$0xff]
    %v55 = vld [vmem:[#allocation5 + $0x38] sm:$0xff]
    %v56 = vld [vmem:[#allocation5 + $0x40] sm:$0xff]
    %v57 = vld [vmem:[#allocation5 + $0x48] sm:$0xff]
    %v58 = vld [vmem:[#allocation5 + $0x50] sm:$0xff]
    %v59 = vld [vmem:[#allocation5 + $0x58] sm:$0xff]
    %v60 = vld [vmem:[#allocation5 + $0x60] sm:$0xff]
    %v61 = vld [vmem:[#allocation5 + $0x68] sm:$0xff]
    %v62 = vld [vmem:[#allocation5 + $0x70] sm:$0xff]
    %v63 = vld [vmem:[#allocation5 + $0x78] sm:$0xff]
    %v64 = vld [vmem:[#allocation5 + $0x80] sm:$0xff]
    %v65 = vld [vmem:[#allocation5 + $0x88] sm:$0xff]
    %v66 = vld [vmem:[#allocation5 + $0x90] sm:$0xff]
    %v67 = vld [vmem:[#allocation5 + $0x98] sm:$0xff]
    %v68 = vld [vmem:[#allocation5 + $0xa0] sm:$0xff]
    %v69 = vld [vmem:[#allocation5 + $0xa8] sm:$0xff]
    %v70 = vld [vmem:[#allocation5 + $0xb0] sm:$0xff]
    %v71 = vld [vmem:[#allocation5 + $0xb8] sm:$0xff]
    %vm72 = vcmask 523264
    %v74 = vsel %vm72, %v41, 0
    %v77 = vsel %vm72, %v43, 0
    %v80 = vsel %vm72, %v45, 0
    %v83 = vsel %vm72, %v47, 0
    %85 = vmatprep.subr.mxu0 0.0
    %86 = vmatpush1.msra.mxu0 %v48
    %87 = vmatprep.subr.mxu0 0.0
    %88 = vmatpush1.msra.mxu0 %v49
    %89 = vmatprep.subr.mxu0 0.0
    %90 = vmatpush1.msra.mxu0 %v50
    %91 = vmatprep.subr.mxu0 0.0
    %92 = vmatpush1.msra.mxu0 %v51
    %93 = vmatprep.subr.mxu0 0.0
    %94 = vmatpush1.msra.mxu0 %v52
    %95 = vmatprep.subr.mxu0 0.0
    %96 = vmatpush1.msra.mxu0 %v53
    %97 = vmatprep.subr.mxu0 0.0
    %98 = vmatpush1.msra.mxu0 %v54
    %99 = vmatprep.subr.mxu0 0.0
    %100 = vmatpush1.msra.mxu0 %v55
    %101 = vmatprep.subr.mxu0 0.0
    %102 = vmatpush1.msra.mxu0 %v56
    %103 = vmatprep.subr.mxu0 0.0
    %104 = vmatpush1.msra.mxu0 %v57
    %105 = vmatprep.subr.mxu0 0.0
    %106 = vmatpush1.msra.mxu0 %v58
    %107 = vmatprep.subr.mxu0 0.0
    %108 = vmatpush1.msra.mxu0 %v59
    %109 = vmatprep.subr.mxu0 0.0
    %110 = vmatpush1.msra.mxu0 %v60
    %111 = vmatprep.subr.mxu0 0.0
    %112 = vmatpush1.msra.mxu0 %v61
    %113 = vmatprep.subr.mxu0 0.0
    %114 = vmatpush1.msra.mxu0 %v62
    %115 = vmatprep.subr.mxu0 0.0
    %116 = vmatpush1.msra.mxu0 %v63
    %117 = vmatprep.subr.mxu0 0.0
    %118 = vmatpush1.msra.mxu0 %v64
    %119 = vmatprep.subr.mxu0 0.0
    %120 = vmatpush1.msra.mxu0 %v65
    %121 = vmatprep.subr.mxu0 0.0
    %122 = vmatpush1.msra.mxu0 %v66
    %123 = vmatprep.subr.mxu0 0.0
    %124 = vmatpush1.msra.mxu0 %v67
    %125 = vmatprep.subr.mxu0 0.0
    %126 = vmatpush1.msra.mxu0 %v68
    %127 = vmatprep.subr.mxu0 0.0
    %128 = vmatpush1.msra.mxu0 %v69
    %129 = vmatprep.subr.mxu0 0.0
    %130 = vmatpush1.msra.mxu0 %v70
    %131 = vmatprep.subr.mxu0 0.0
    %132 = vmatpush1.msra.mxu0 %v71
    %133 = vmatprep.subr.mxu0 0.0
    %134 = vmatpush1.msra.mxu0 0.0
    %135 = vmatprep.subr.mxu0 0.0
    %136 = vmatpush1.msra.mxu0 0.0
    %137 = vmatprep.subr.mxu0 0.0
    %138 = vmatpush1.msra.mxu0 0.0
    %139 = vmatprep.subr.mxu0 0.0
    %140 = vmatpush1.msra.mxu0 0.0
    %141 = vmatprep.subr.mxu0 0.0
    %142 = vmatpush1.msra.mxu0 0.0
    %143 = vmatprep.subr.mxu0 0.0
    %144 = vmatpush1.msra.mxu0 0.0
    %145 = vmatprep.subr.mxu0 0.0
    %146 = vmatpush1.msra.mxu0 0.0
    %147 = vmatprep.subr.mxu0 0.0
    %148 = vmatpush1.msra.mxu0 0.0
    %149 = vmatprep.mubr.f32.mxu0 %v74
    %150 = vmatmul.mubr.f32.gmra.mrb[0].mxu0 %v40
    %v151 = vpop.f32.mrb[0].mxu0
    %v152 = vadd.f32 0.0, %v151
    %v153 = vpop.f32.mrb[0].mxu0
    %154 = vmatprep.mubr.f32.mxu0 %v77
    %155 = vmatmul.mubr.f32.gmra.mrb[0].mxu0 %v42
    %v156 = vpop.f32.mrb[0].mxu0
    %v157 = vadd.f32 0.0, %v156
    %v158 = vpop.f32.mrb[0].mxu0
    %159 = vmatprep.mubr.f32.mxu0 %v80
    %160 = vmatmul.mubr.f32.gmra.mrb[0].mxu0 %v44
    %v161 = vpop.f32.mrb[0].mxu0
    %v162 = vadd.f32 0.0, %v161
    %v163 = vpop.f32.mrb[0].mxu0
    %164 = vmatprep.mubr.f32.mxu0 %v83
    %165 = vmatmul.mubr.f32.gmra.mrb[0].mxu0 %v46
    %v166 = vpop.f32.mrb[0].mxu0
    %v167 = vadd.f32 0.0, %v166
    %v168 = vpop.f32.mrb[0].mxu0
    %169 = vdwg.mxu0
    %170 = vst [vmem:[#allocation7] sm:$0xff] %v152
    %171 = vst [vmem:[#allocation7 + $0x8] sm:$0xff] %v157
    %172 = vst [vmem:[#allocation7 + $0x10] sm:$0xff] %v162
    %173 = vst [vmem:[#allocation7 + $0x18] sm:$0xff] %v167
    // Predicated region
    $region18: #{tpu_custom_call.1} parent=1 // pred_check
      _
    $region19: #{tpu_custom_call.1} parent=1 // pred_check_branch
      %175 = sbr.rel (0) target = $region21
    $region20: #{tpu_custom_call.1} parent=1 // pred_region
      %s177 = ssub.s32 512, 512
      %178 = vsyncadd [#allocation4], %s177
      %s179 = sshll.u32 [#allocation7], 4
      %s180 = int_to_ptr.vmem [resolvable:$true] %s179
      %185 = dma.vmem_to_hbm [thread:$0]  %s180, 512, %s2, [#allocation4], 128, 128, 8
    $region21: #{tpu_custom_call.1} parent=1 // pred_fallthru
      _
    // Predicated region
    $region22: #{tpu_custom_call.1} parent=1 // pred_check
      _
    $region23: #{tpu_custom_call.1} parent=1 // pred_check_branch
      %187 = sbr.rel (0) target = $region25
    $region24: #{tpu_custom_call.1} parent=1 // pred_region
      %188 = dma.done [#allocation4], 512
    $region25: #{tpu_custom_call.1} parent=1 // pred_fallthru
      _
    %189 = vsyncpa [#allocation3], 1
    %190 = vsyncpa [#allocation6], 1
    %191 = vsyncpa [#allocation4], 1

</llo_original>
